<compile_context>
chip_gen: v7x
topology: tpu7x:2x2x1
jax: 0.10.0
libtpu: 0.0.40
codegen_flags: <defaults>
</compile_context>

<pallas_src>
import functools

import jax
import jax.numpy as jnp
from jax.experimental import pallas as pl
from jax.experimental.pallas import tpu as pltpu


def _param_sigmoid_kernel(p_ref, x_ref, o_ref, *, compute_dtype):
    # p_ref lives in SMEM: [a1, a2, a3, a4, a5] (float32 scalars).
    a1 = p_ref[0].astype(compute_dtype)
    a2 = p_ref[1].astype(compute_dtype)
    a3 = p_ref[2].astype(compute_dtype)
    a4 = p_ref[3].astype(compute_dtype)
    a5 = p_ref[4].astype(compute_dtype)
    x = x_ref[...].astype(compute_dtype)
    z = a2 * x + a3
    # sigmoid(z) == 0.5 * tanh(0.5 * z) + 0.5  -> one EUP op (tanh) instead of
    # exp + reciprocal; VPU slot only does the fused mul/adds.
    sig = 0.5 * jnp.tanh(0.5 * z) + 0.5
    o_ref[...] = (a1 * sig + (a4 * x + a5)).astype(o_ref.dtype)


def _device_kind():
    try:
        return jax.devices()[0].device_kind.lower()
    except Exception:
        return ""


def param_sigmoid(x, params, *, donate_x=False):
    """x: any-shape float array (e.g. NCHW). params: (5,) array [a1..a5]."""
    orig_shape = x.shape
    dtype = x.dtype
    itemsize = jnp.dtype(dtype).itemsize
    flat = x.reshape(-1)
    n = flat.shape[0]

    kind = _device_kind()
    multi_tc = "v7" in kind  # v7x: 2 TensorCores/chip; v5e/v6e: 1 (serial grid)
    # v5 family has no bf16 VPU/EUP -> upcast there; v6e/v7x compute natively
    # in bf16 to halve VPU/EUP work per HBM byte.
    bf16_math = (dtype == jnp.bfloat16) and ("v5" not in kind)
    compute_dtype = jnp.bfloat16 if bf16_math else jnp.float32

    kernel = functools.partial(_param_sigmoid_kernel, compute_dtype=compute_dtype)
    params_f32 = params.reshape(-1).astype(jnp.float32)

    target_block_bytes = (8 if multi_tc else 4) * 1024 * 1024
    vmem_limit = (48 if multi_tc else 32) * 1024 * 1024
    io_alias = {1: 0} if donate_x else {}

    if n % 128 == 0:
        # Fast path: copy-free lane-dense 2D view. Pick the widest last dim
        # that divides n exactly, preferring >= 8 rows (full sublanes).
        lane = None
        for cand in (2048, 1024, 512, 256, 128):
            if n % cand == 0 and n // cand >= 8:
                lane = cand
                break
        if lane is None:
            for cand in (2048, 1024, 512, 256, 128):
                if n % cand == 0:
                    lane = cand
                    break
        rows = n // lane
        x2d = flat.reshape(rows, lane)

        # ~4-8 MiB row blocks; partial last block is store-masked by Pallas.
        row_block = min(rows, max(8, target_block_bytes // (lane * itemsize)))
        if row_block != rows:
            row_block = max(8, (row_block // 8) * 8)
        if multi_tc and rows >= 16:
            # Even, balanced block count so both TensorCores get equal work.
            n_blocks = pl.cdiv(rows, row_block)
            n_blocks = max(2, n_blocks + (n_blocks % 2))
            row_block = min(rows, max(8, ((pl.cdiv(rows, n_blocks) + 7) // 8) * 8))
        n_blocks = pl.cdiv(rows, row_block)
        dim_sem = (pltpu.CORE_PARALLEL,) if (multi_tc and n_blocks >= 2) else ("parallel",)

        out2d = pl.pallas_call(
            kernel,
            out_shape=jax.ShapeDtypeStruct((rows, lane), dtype),
            grid_spec=pltpu.PrefetchScalarGridSpec(
                num_scalar_prefetch=0,
                grid=(n_blocks,),
                in_specs=[
                    pl.BlockSpec(memory_space=pltpu.SMEM),              # a1..a5
                    pl.BlockSpec((row_block, lane), lambda i: (i, 0)),  # x tile
                ],
                out_specs=pl.BlockSpec((row_block, lane), lambda i: (i, 0)),
            ),
            compiler_params=pltpu.CompilerParams(
                dimension_semantics=dim_sem,
                vmem_limit_bytes=vmem_limit,
            ),
            input_output_aliases=io_alias,
        )(params_f32, x2d)
        return out2d.reshape(orig_shape)

    # Awkward element count (n % 128 != 0): stream the flat 1D view in
    # (8*128)-aligned blocks; Pallas store-masks the partial last block.
    # One HBM read + one write -- no jnp.pad / [:n]-slice extra passes.
    block_n = min(n, max(1024, target_block_bytes // itemsize))
    if block_n != n:
        block_n = max(1024, (block_n // 1024) * 1024)
    n_blocks = pl.cdiv(n, block_n)
    dim_sem = (pltpu.CORE_PARALLEL,) if (multi_tc and n_blocks >= 2) else ("parallel",)

    out_flat = pl.pallas_call(
        kernel,
        out_shape=jax.ShapeDtypeStruct((n,), dtype),
        grid_spec=pltpu.PrefetchScalarGridSpec(
            num_scalar_prefetch=0,
            grid=(n_blocks,),
            in_specs=[
                pl.BlockSpec(memory_space=pltpu.SMEM),       # a1..a5
                pl.BlockSpec((block_n,), lambda i: (i,)),    # x chunk
            ],
            out_specs=pl.BlockSpec((block_n,), lambda i: (i,)),
        ),
        compiler_params=pltpu.CompilerParams(
            dimension_semantics=dim_sem,
            vmem_limit_bytes=vmem_limit,
        ),
        input_output_aliases=io_alias,
    )(params_f32, flat)
    return out_flat.reshape(orig_shape)


if __name__ == "__main__":
    key = jax.random.PRNGKey(0)
    k_x, k_p, k_x2 = jax.random.split(key, 3)

    # Deterministic "torch.randn(1)"-style scalar parameters a1..a5.
    params = jax.random.normal(k_p, (5,), dtype=jnp.float32)

    def ref_fn(xx):
        a1, a2, a3, a4, a5 = (params[i] for i in range(5))
        return a1 * jax.nn.sigmoid(a2 * xx + a3) + a4 * xx + a5

    # Main check: small NCHW input (lane-dense fast path).
    x = jax.random.normal(k_x, (2, 4, 16, 16), dtype=jnp.float32)
    y = jax.block_until_ready(param_sigmoid(x, params))
    assert y.shape == x.shape and y.dtype == x.dtype
    assert jnp.allclose(y, ref_fn(x), atol=1e-5, rtol=1e-5)

    # Awkward element count: exercises the copy-free 1D masked path.
    x_odd = jax.random.normal(k_x2, (3, 5, 7), dtype=jnp.float32)
    y_odd = jax.block_until_ready(param_sigmoid(x_odd, params))
    assert y_odd.shape == x_odd.shape and y_odd.dtype == x_odd.dtype
    assert jnp.allclose(y_odd, ref_fn(x_odd), atol=1e-5, rtol=1e-5)

    print("KERNEL_OK")
</pallas_src>

<mosaic_0001>
module attributes {stable_mosaic.version = 11 : i64} {
  func.func @_param_sigmoid_kernel(%arg0: i32, %arg1: memref<5xf32, #tpu.memory_space<smem>>, %arg2: memref<8x256xf32, #tpu.memory_space<vmem>>, %arg3: memref<8x256xf32, #tpu.memory_space<vmem>>) attributes {dimension_semantics = [#tpu.dimension_semantics<parallel>], iteration_bounds = array<i64: 1>, scalar_prefetch = 0 : i64, scratch_operands = 0 : i64, tpu.core_type = #tpu.core_type<tc>, window_params = [{transform_indices = @transform_0, window_bounds = array<i64: 5>}, {transform_indices = @transform_1, window_bounds = array<i64: 8, 256>}, {transform_indices = @transform_2, window_bounds = array<i64: 8, 256>}]} {
    %c0 = arith.constant 0 : index
    %0 = memref.load %arg1[%c0] : memref<5xf32, #tpu.memory_space<smem>>
    %c1 = arith.constant 1 : index
    %1 = memref.load %arg1[%c1] : memref<5xf32, #tpu.memory_space<smem>>
    %c2 = arith.constant 2 : index
    %2 = memref.load %arg1[%c2] : memref<5xf32, #tpu.memory_space<smem>>
    %c3 = arith.constant 3 : index
    %3 = memref.load %arg1[%c3] : memref<5xf32, #tpu.memory_space<smem>>
    %c4 = arith.constant 4 : index
    %4 = memref.load %arg1[%c4] : memref<5xf32, #tpu.memory_space<smem>>
    %c0_0 = arith.constant 0 : index
    %c0_1 = arith.constant 0 : index
    %5 = vector.load %arg2[%c0_0, %c0_1] : memref<8x256xf32, #tpu.memory_space<vmem>>, vector<8x256xf32>
    %6 = vector.broadcast %1 : f32 to vector<8x256xf32>
    %7 = arith.mulf %6, %5 : vector<8x256xf32>
    %8 = vector.broadcast %2 : f32 to vector<8x256xf32>
    %9 = arith.addf %7, %8 : vector<8x256xf32>
    %cst = arith.constant 5.000000e-01 : f32
    %10 = vector.broadcast %cst : f32 to vector<8x256xf32>
    %11 = arith.mulf %10, %9 : vector<8x256xf32>
    %12 = math.tanh %11 : vector<8x256xf32>
    %cst_2 = arith.constant 5.000000e-01 : f32
    %13 = vector.broadcast %cst_2 : f32 to vector<8x256xf32>
    %14 = arith.mulf %13, %12 : vector<8x256xf32>
    %cst_3 = arith.constant 5.000000e-01 : f32
    %15 = vector.broadcast %cst_3 : f32 to vector<8x256xf32>
    %16 = arith.addf %14, %15 : vector<8x256xf32>
    %17 = vector.broadcast %0 : f32 to vector<8x256xf32>
    %18 = arith.mulf %17, %16 : vector<8x256xf32>
    %19 = vector.broadcast %3 : f32 to vector<8x256xf32>
    %20 = arith.mulf %19, %5 : vector<8x256xf32>
    %21 = vector.broadcast %4 : f32 to vector<8x256xf32>
    %22 = arith.addf %20, %21 : vector<8x256xf32>
    %23 = arith.addf %18, %22 : vector<8x256xf32>
    %c0_4 = arith.constant 0 : index
    %c0_5 = arith.constant 0 : index
    %24 = vector.load %arg3[%c0_4, %c0_5] : memref<8x256xf32, #tpu.memory_space<vmem>>, vector<8x256xf32>
    tpu.vector_store %arg3[%c0_4, %c0_5], %23 {strides = array<i32>} : memref<8x256xf32, #tpu.memory_space<vmem>>, vector<8x256xf32>,
    return
  }
  func.func @transform_0(%arg0: i32) -> i32 {
    %c0_i32 = arith.constant 0 : i32
    %c0_i32_0 = arith.constant 0 : i32
    return %c0_i32 : i32
  }
  func.func @transform_1(%arg0: i32) -> (i32, i32) {
    %c0_i32 = arith.constant 0 : i32
    %c0_i32_0 = arith.constant 0 : i32
    return %arg0, %c0_i32 : i32, i32
  }
  func.func @transform_2(%arg0: i32) -> (i32, i32) {
    %c0_i32 = arith.constant 0 : i32
    %c0_i32_0 = arith.constant 0 : i32
    return %arg0, %c0_i32 : i32, i32
  }
}

</mosaic_0001>

<llo_original>
// kernel: tpu_custom_call.1
$region0: #{tpu_custom_call.1}
  #allocation0 [shape = 'u32[]', space=smem, size = 0x4, offset = 0x4, fixed_abs, tag = 'smem constant byte address 0x4 - core index']
  #allocation1 [shape = 'u32[144,128]{1,0:T(1,128)}', space=vmem, size = 0x12000, scoped, tag = 'internal scratch']
  %s0 = inlined_call_operand.hbm [shape: f32[5], index: 0, kind: input, shape index: {}]
  %s1 = inlined_call_operand.hbm [shape: f32[8,256], index: 1, kind: input, shape index: {}]
  %s2 = inlined_call_operand.hbm [shape: f32[8,256], index: 2, kind: output, shape index: {}]
  %s3 = sld [smem:[#allocation0]]
  $region26: #{tpu_custom_call.1} parent=0
    _
  %s5 = ssub.s32 1, %s3
  %s6 = scalar_select 0, %s5, %s3
  $region1: #{tpu_custom_call.1} parent=0
    #allocation2 [shape = 'u8[512]{0}', space=smem, size = 0x200, scoped, tag = 'input window, operand 0, single buffered']
    #allocation3 [shape = 's32[1]{0}', space=sflag, size = 0x4, scoped, tag = 'scoped memory for tpu_custom_call.1']
    #allocation4 [shape = 's32[1]{0}', space=sflag, size = 0x4, scoped, tag = 'scoped memory for tpu_custom_call.1']
    #allocation5 [shape = 's32[1]{0}', space=sflag, size = 0x4, scoped, tag = 'scoped memory for tpu_custom_call.1']
    #allocation6 [shape = 'u8[8192]{0}', space=vmem, size = 0x2000, scoped, tag = 'input window, operand 1, single buffered']
    #allocation7 [shape = 'u8[8192]{0}', space=vmem, size = 0x2000, scoped, tag = 'output window, operand 0, single buffered']
    %7 = vsyncpa [#allocation5], 0
    %8 = vsyncpa [#allocation3], 0
    %9 = vsyncpa [#allocation4], 0
    // Predicated region
    $region2: #{tpu_custom_call.1} parent=1 // pred_check
      _
    $region3: #{tpu_custom_call.1} parent=1 // pred_check_branch
      %11 = sbr.rel (0) target = $region5
    $region4: #{tpu_custom_call.1} parent=1 // pred_region
      %s13 = ssub.s32 16, 16
      %14 = vsyncadd [#allocation5], %s13
      %17 = dma.hbm_to_smem %s0, 16, [#allocation2], [#allocation5]
    $region5: #{tpu_custom_call.1} parent=1 // pred_fallthru
      _
    // Predicated region
    $region6: #{tpu_custom_call.1} parent=1 // pred_check
      _
    $region7: #{tpu_custom_call.1} parent=1 // pred_check_branch
      %19 = sbr.rel (0) target = $region9
    $region8: #{tpu_custom_call.1} parent=1 // pred_region
      %s21 = ssub.s32 256, 256
      %22 = vsyncadd [#allocation3], %s21
      %s24 = sshll.u32 [#allocation6], 4
      %s25 = int_to_ptr.vmem [resolvable:$true] %s24
      %27 = dma.hbm_to_vmem [thread:$0]  %s1, 256, %s25, [#allocation3]
    $region9: #{tpu_custom_call.1} parent=1 // pred_fallthru
      _
    // Predicated region
    $region10: #{tpu_custom_call.1} parent=1 // pred_check
      _
    $region11: #{tpu_custom_call.1} parent=1 // pred_check_branch
      %29 = sbr.rel (0) target = $region13
    $region12: #{tpu_custom_call.1} parent=1 // pred_region
      %30 = dma.done [#allocation5], 16
    $region13: #{tpu_custom_call.1} parent=1 // pred_fallthru
      _
    // Predicated region
    $region14: #{tpu_custom_call.1} parent=1 // pred_check
      _
    $region15: #{tpu_custom_call.1} parent=1 // pred_check_branch
      %32 = sbr.rel (0) target = $region17
    $region16: #{tpu_custom_call.1} parent=1 // pred_region
      %33 = dma.done [#allocation3], 256
    $region17: #{tpu_custom_call.1} parent=1 // pred_fallthru
      _
    %34 = sfence
    %s35 = sld [smem:[#allocation2]]
    %s36 = sld [smem:[#allocation2 + $0x1]]
    %s37 = sld [smem:[#allocation2 + $0x2]]
    %s38 = sld [smem:[#allocation2 + $0x3]]
    %s39 = sld [smem:[#allocation2 + $0x4]]
    %v40 = vld [vmem:[#allocation6] sm:$0xff]
    %v41 = vld [vmem:[#allocation6 + $0x8] sm:$0xff]
    %v42 = vstv %s36
    %v43 = vmul.f32 %v42, %v40
    %v44 = vmul.f32 %v42, %v41
    %v45 = vstv %s37
    %v46 = vadd.f32 %v43, %v45
    %v47 = vadd.f32 %v44, %v45
    %v48 = vmul.f32 %v46, 0.5
    %v49 = vmul.f32 %v47, 0.5
    %v50 = vtanh.pop %v48
    %v51 = vtanh.pop %v49
    %v52 = vmul.f32 %v50, 0.5
    %v53 = vmul.f32 %v51, 0.5
    %v54 = vadd.f32 %v52, 0.5
    %v55 = vadd.f32 %v53, 0.5
    %v56 = vstv %s35
    %v57 = vmul.f32 %v56, %v54
    %v58 = vmul.f32 %v56, %v55
    %v59 = vstv %s38
    %v60 = vmul.f32 %v59, %v40
    %v61 = vmul.f32 %v59, %v41
    %v62 = vstv %s39
    %v63 = vadd.f32 %v60, %v62
    %v64 = vadd.f32 %v61, %v62
    %v65 = vadd.f32 %v57, %v63
    %v66 = vadd.f32 %v58, %v64
    %67 = vst [vmem:[#allocation7] sm:$0xff] %v65
    %68 = vst [vmem:[#allocation7 + $0x8] sm:$0xff] %v66
    // Predicated region
    $region18: #{tpu_custom_call.1} parent=1 // pred_check
      _
    $region19: #{tpu_custom_call.1} parent=1 // pred_check_branch
      %70 = sbr.rel (0) target = $region21
    $region20: #{tpu_custom_call.1} parent=1 // pred_region
      %s72 = ssub.s32 256, 256
      %73 = vsyncadd [#allocation4], %s72
      %s75 = sshll.u32 [#allocation7], 4
      %s76 = int_to_ptr.vmem [resolvable:$true] %s75
      %78 = dma.vmem_to_hbm [thread:$0]  %s76, 256, %s2, [#allocation4]
    $region21: #{tpu_custom_call.1} parent=1 // pred_fallthru
      _
    // Predicated region
    $region22: #{tpu_custom_call.1} parent=1 // pred_check
      _
    $region23: #{tpu_custom_call.1} parent=1 // pred_check_branch
      %80 = sbr.rel (0) target = $region25
    $region24: #{tpu_custom_call.1} parent=1 // pred_region
      %81 = dma.done [#allocation4], 256
    $region25: #{tpu_custom_call.1} parent=1 // pred_fallthru
      _
    %82 = vsyncpa [#allocation3], 1
    %83 = vsyncpa [#allocation4], 1
    %84 = vsyncpa [#allocation5], 1

</llo_original>
